<compile_context>
chip_gen: v6e
topology: v6e:2x2x1
jax: 0.10.0
libtpu: 0.0.40
codegen_flags: <defaults>
</compile_context>

<pallas_src>
import functools

import jax
import jax.numpy as jnp
from jax.experimental import pallas as pl
from jax.experimental.pallas import tpu as pltpu

RRELU_SLOPE = (1.0 / 8.0 + 1.0 / 3.0) / 2.0  # eval-mode RReLU negative slope
BN_EPS = 1e-5

_MIB = 1024 * 1024


def _round_up(x, m):
    return ((x + m - 1) // m) * m


def resblock_kernel(x_ref, w1_ref, t1_ref, w2_ref, t2_ref, o_ref):
    """One (TN, Dp) row-tile: two folded (matmul + shift + RReLU) layers + residual."""
    x = x_ref[...]                                   # (TN, Dp) f32

    # fc1 + bn1 folded into w1/t1, RReLU(eval) as max(h, slope*h)
    h = jnp.dot(x.astype(w1_ref.dtype), w1_ref[...],
                preferred_element_type=jnp.float32) + t1_ref[...]
    h = jnp.maximum(h, h * RRELU_SLOPE)

    # fc2 + bn2 folded into w2/t2, RReLU(eval)
    h = jnp.dot(h.astype(w2_ref.dtype), w2_ref[...],
                preferred_element_type=jnp.float32) + t2_ref[...]
    h = jnp.maximum(h, h * RRELU_SLOPE)

    # residual add
    o_ref[...] = (h + x).astype(o_ref.dtype)


@functools.partial(jax.jit, static_argnames=("tile_rows", "matmul_dtype"))
def resblock_forward(x, params, *, tile_rows=512, matmul_dtype=jnp.float32):
    """Fold BN+bias into weights, pad to TPU-friendly shapes, run the tiled kernel."""
    (w1, b1, g1, be1, rm1, rv1, w2, b2, g2, be2, rm2, rv2) = params
    N, D = x.shape

    # ---- Fold eval-mode BatchNorm1d + Linear bias into weight/shift -------------
    # BN(fc(x)) = s*(x@W.T + b - rm) + be  =  x @ (W.T * s) + (s*(b - rm) + be)
    s1 = g1 * jax.lax.rsqrt(rv1 + BN_EPS)
    s2 = g2 * jax.lax.rsqrt(rv2 + BN_EPS)
    w1f = (w1.T * s1[None, :]).astype(jnp.float32)       # (D, D), already transposed
    w2f = (w2.T * s2[None, :]).astype(jnp.float32)
    t1f = (s1 * (b1 - rm1) + be1).astype(jnp.float32)     # (D,)
    t2f = (s2 * (b2 - rm2) + be2).astype(jnp.float32)

    # ---- Pad to lane-dense / tileable shapes ------------------------------------
    Dp = _round_up(max(D, 128), 128)                      # lane-dense feature dim
    TN = min(tile_rows, _round_up(N, 8))                  # row tile (multiple of 8)
    Np = _round_up(N, TN)
    n_tiles = Np // TN

    xp = jnp.zeros((Np, Dp), jnp.float32).at[:N, :D].set(x.astype(jnp.float32))
    w1p = jnp.zeros((Dp, Dp), matmul_dtype).at[:D, :D].set(w1f.astype(matmul_dtype))
    w2p = jnp.zeros((Dp, Dp), matmul_dtype).at[:D, :D].set(w2f.astype(matmul_dtype))
    t1p = jnp.zeros((1, Dp), jnp.float32).at[0, :D].set(t1f)
    t2p = jnp.zeros((1, Dp), jnp.float32).at[0, :D].set(t2f)

    # ---- Specs: x/out stream row-tiles; weights/shifts constant (VMEM-resident) --
    x_spec = pl.BlockSpec((TN, Dp), lambda i: (i, 0))
    w_spec = pl.BlockSpec((Dp, Dp), lambda i: (0, 0))
    t_spec = pl.BlockSpec((1, Dp), lambda i: (0, 0))
    o_spec = pl.BlockSpec((TN, Dp), lambda i: (i, 0))

    # ---- VMEM budget (double-buffered) & cost hint -------------------------------
    w_itemsize = jnp.dtype(matmul_dtype).itemsize
    vmem_needed = (2 * 2 * TN * Dp * 4            # x + out tiles, double-buffered
                   + 2 * 2 * Dp * Dp * w_itemsize  # two weight tiles
                   + 2 * 2 * Dp * 4)               # two shift rows
    vmem_limit = int(min(max(2 * vmem_needed, 32 * _MIB), 56 * _MIB))  # v7x headroom

    cost = pl.CostEstimate(
        flops=2 * 2 * Np * Dp * Dp + 6 * Np * Dp,
        transcendentals=0,
        bytes_accessed=2 * Np * Dp * 4 + 2 * Dp * Dp * w_itemsize + 2 * Dp * 4,
    )

    out_p = pl.pallas_call(
        resblock_kernel,
        out_shape=jax.ShapeDtypeStruct((Np, Dp), x.dtype),
        grid=(n_tiles,),
        in_specs=[x_spec, w_spec, t_spec, w_spec, t_spec],
        out_specs=o_spec,
        compiler_params=pltpu.CompilerParams(
            dimension_semantics=("parallel",),
            vmem_limit_bytes=vmem_limit,
        ),
        cost_estimate=cost,
    )(xp, w1p, t1p, w2p, t2p)

    return out_p[:N, :D]


def reference_forward(x, params):
    """Pure-JAX reference with identical eval-mode semantics (unfolded form)."""
    (w1, b1, g1, be1, rm1, rv1, w2, b2, g2, be2, rm2, rv2) = params
    rrelu = lambda v: jnp.where(v >= 0, v, v * RRELU_SLOPE)
    bn = lambda v, g, be, rm, rv: g * (v - rm) / jnp.sqrt(rv + BN_EPS) + be
    h = rrelu(bn(x @ w1.T + b1, g1, be1, rm1, rv1))
    h = rrelu(bn(h @ w2.T + b2, g2, be2, rm2, rv2))
    return h + x


def init_params(key, in_size):
    """Deterministic parameter init matching PyTorch shapes for ResBlock(in_size)."""
    ks = jax.random.split(key, 8)
    bound = 1.0 / jnp.sqrt(in_size)
    w1 = jax.random.uniform(ks[0], (in_size, in_size), jnp.float32, -bound, bound)
    b1 = jax.random.uniform(ks[1], (in_size,), jnp.float32, -bound, bound)
    w2 = jax.random.uniform(ks[2], (in_size, in_size), jnp.float32, -bound, bound)
    b2 = jax.random.uniform(ks[3], (in_size,), jnp.float32, -bound, bound)
    g1 = 1.0 + 0.1 * jax.random.normal(ks[4], (in_size,), jnp.float32)
    be1 = 0.1 * jax.random.normal(ks[5], (in_size,), jnp.float32)
    rm1 = 0.05 * jax.random.normal(ks[6], (in_size,), jnp.float32)
    rv1 = 1.0 + 0.1 * jax.random.uniform(ks[7], (in_size,), jnp.float32)
    g2 = jnp.ones((in_size,), jnp.float32)
    be2 = jnp.zeros((in_size,), jnp.float32)
    rm2 = 0.02 * jnp.arange(in_size, dtype=jnp.float32)
    rv2 = jnp.ones((in_size,), jnp.float32) + 0.01 * jnp.arange(in_size, dtype=jnp.float32)
    return (w1, b1, g1, be1, rm1, rv1, w2, b2, g2, be2, rm2, rv2)


if __name__ == "__main__":
    key = jax.random.PRNGKey(0)
    kx, kp, kx2 = jax.random.split(key, 3)

    # Small shape consistent with the module (batch=8, in_size=32).
    N, D = 8, 32
    x = jax.random.normal(kx, (N, D), jnp.float32)
    params = init_params(kp, D)

    out = jax.block_until_ready(resblock_forward(x, params))
    ref = reference_forward(x, params)
    assert out.shape == (N, D) and out.dtype == jnp.float32
    assert jnp.allclose(out, ref, atol=1e-4, rtol=1e-4), "mismatch vs reference (small)"

    # Larger batch exercising the row grid (multiple tiles + row padding).
    N2 = 1000
    x2 = jax.random.normal(kx2, (N2, D), jnp.float32)
    out2 = jax.block_until_ready(resblock_forward(x2, params, tile_rows=512))
    ref2 = reference_forward(x2, params)
    assert out2.shape == (N2, D)
    assert jnp.allclose(out2, ref2, atol=1e-4, rtol=1e-4), "mismatch vs reference (tiled)"

    print("KERNEL_OK")
</pallas_src>

<mosaic_0001>
module attributes {stable_mosaic.version = 11 : i64} {
  func.func @resblock_kernel(%arg0: i32, %arg1: memref<8x128xf32, #tpu.memory_space<vmem>>, %arg2: memref<128x128xf32, #tpu.memory_space<vmem>>, %arg3: memref<1x128xf32, #tpu.memory_space<vmem>>, %arg4: memref<128x128xf32, #tpu.memory_space<vmem>>, %arg5: memref<1x128xf32, #tpu.memory_space<vmem>>, %arg6: memref<8x128xf32, #tpu.memory_space<vmem>>) attributes {dimension_semantics = [#tpu.dimension_semantics<parallel>], iteration_bounds = array<i64: 1>, scalar_prefetch = 0 : i64, scratch_operands = 0 : i64, tpu.core_type = #tpu.core_type<tc>, window_params = [{transform_indices = @transform_0, window_bounds = array<i64: 8, 128>}, {pipeline_mode = #tpu.pipeline_mode<synchronous>, transform_indices = @transform_1, window_bounds = array<i64: 128, 128>}, {pipeline_mode = #tpu.pipeline_mode<synchronous>, transform_indices = @transform_2, window_bounds = array<i64: 1, 128>}, {pipeline_mode = #tpu.pipeline_mode<synchronous>, transform_indices = @transform_3, window_bounds = array<i64: 128, 128>}, {pipeline_mode = #tpu.pipeline_mode<synchronous>, transform_indices = @transform_4, window_bounds = array<i64: 1, 128>}, {transform_indices = @transform_5, window_bounds = array<i64: 8, 128>}]} {
    %c0 = arith.constant 0 : index
    %c0_0 = arith.constant 0 : index
    %0 = vector.load %arg1[%c0, %c0_0] : memref<8x128xf32, #tpu.memory_space<vmem>>, vector<8x128xf32>
    %c0_1 = arith.constant 0 : index
    %c0_2 = arith.constant 0 : index
    %1 = vector.load %arg2[%c0_1, %c0_2] : memref<128x128xf32, #tpu.memory_space<vmem>>, vector<128x128xf32>
    %cst = arith.constant dense<0.000000e+00> : vector<8x128xf32>
    %2 = tpu.matmul %0, %1, %cst {dimension_numbers = #tpu.dot_dimension_numbers<[1], [0], [0], [1], [0, 0, 1, 1], [], []>} : vector<8x128xf32>, vector<128x128xf32>, vector<8x128xf32> -> vector<8x128xf32>
    %c0_3 = arith.constant 0 : index
    %c0_4 = arith.constant 0 : index
    %3 = vector.load %arg3[%c0_3, %c0_4] : memref<1x128xf32, #tpu.memory_space<vmem>>, vector<1x128xf32>
    %4 = vector.broadcast %3 : vector<1x128xf32> to vector<8x128xf32>
    %5 = arith.addf %2, %4 : vector<8x128xf32>
    %cst_5 = arith.constant 0.229166672 : f32
    %6 = vector.broadcast %cst_5 : f32 to vector<8x128xf32>
    %7 = arith.mulf %5, %6 : vector<8x128xf32>
    %8 = arith.maximumf %5, %7 : vector<8x128xf32>
    %c0_6 = arith.constant 0 : index
    %c0_7 = arith.constant 0 : index
    %9 = vector.load %arg4[%c0_6, %c0_7] : memref<128x128xf32, #tpu.memory_space<vmem>>, vector<128x128xf32>
    %cst_8 = arith.constant dense<0.000000e+00> : vector<8x128xf32>
    %10 = tpu.matmul %8, %9, %cst_8 {dimension_numbers = #tpu.dot_dimension_numbers<[1], [0], [0], [1], [0, 0, 1, 1], [], []>} : vector<8x128xf32>, vector<128x128xf32>, vector<8x128xf32> -> vector<8x128xf32>
    %c0_9 = arith.constant 0 : index
    %c0_10 = arith.constant 0 : index
    %11 = vector.load %arg5[%c0_9, %c0_10] : memref<1x128xf32, #tpu.memory_space<vmem>>, vector<1x128xf32>
    %12 = vector.broadcast %11 : vector<1x128xf32> to vector<8x128xf32>
    %13 = arith.addf %10, %12 : vector<8x128xf32>
    %cst_11 = arith.constant 0.229166672 : f32
    %14 = vector.broadcast %cst_11 : f32 to vector<8x128xf32>
    %15 = arith.mulf %13, %14 : vector<8x128xf32>
    %16 = arith.maximumf %13, %15 : vector<8x128xf32>
    %17 = arith.addf %16, %0 : vector<8x128xf32>
    %c0_12 = arith.constant 0 : index
    %c0_13 = arith.constant 0 : index
    %18 = vector.load %arg6[%c0_12, %c0_13] : memref<8x128xf32, #tpu.memory_space<vmem>>, vector<8x128xf32>
    tpu.vector_store %arg6[%c0_12, %c0_13], %17 {strides = array<i32>} : memref<8x128xf32, #tpu.memory_space<vmem>>, vector<8x128xf32>,
    return
  }
  func.func @transform_0(%arg0: i32) -> (i32, i32) {
    %c0_i32 = arith.constant 0 : i32
    %c0_i32_0 = arith.constant 0 : i32
    return %arg0, %c0_i32 : i32, i32
  }
  func.func @transform_1(%arg0: i32) -> (i32, i32) {
    %c0_i32 = arith.constant 0 : i32
    %c0_i32_0 = arith.constant 0 : i32
    %c0_i32_1 = arith.constant 0 : i32
    return %c0_i32, %c0_i32_0 : i32, i32
  }
  func.func @transform_2(%arg0: i32) -> (i32, i32) {
    %c0_i32 = arith.constant 0 : i32
    %c0_i32_0 = arith.constant 0 : i32
    %c0_i32_1 = arith.constant 0 : i32
    return %c0_i32, %c0_i32_0 : i32, i32
  }
  func.func @transform_3(%arg0: i32) -> (i32, i32) {
    %c0_i32 = arith.constant 0 : i32
    %c0_i32_0 = arith.constant 0 : i32
    %c0_i32_1 = arith.constant 0 : i32
    return %c0_i32, %c0_i32_0 : i32, i32
  }
  func.func @transform_4(%arg0: i32) -> (i32, i32) {
    %c0_i32 = arith.constant 0 : i32
    %c0_i32_0 = arith.constant 0 : i32
    %c0_i32_1 = arith.constant 0 : i32
    return %c0_i32, %c0_i32_0 : i32, i32
  }
  func.func @transform_5(%arg0: i32) -> (i32, i32) {
    %c0_i32 = arith.constant 0 : i32
    %c0_i32_0 = arith.constant 0 : i32
    return %arg0, %c0_i32 : i32, i32
  }
}

</mosaic_0001>

<llo_original>
// kernel: resblock_forward.1
$region0: #{resblock_forward.1}
  #allocation0 [shape = 'u32[]', space=smem, size = 0x4, offset = 0x4, fixed_abs, tag = 'smem constant byte address 0x4 - core index']
  #allocation1 [shape = 'u32[144,128]{1,0:T(1,128)}', space=vmem, size = 0x12000, scoped, tag = 'internal scratch']
  %s0 = inlined_call_operand.vmem [shape: f32[8,128], index: 0, kind: input, shape index: {}]
  %s1 = inlined_call_operand.vmem [shape: f32[128,128], index: 1, kind: input, shape index: {}]
  %s2 = inlined_call_operand.vmem [shape: f32[1,128], index: 2, kind: input, shape index: {}]
  %s3 = inlined_call_operand.vmem [shape: f32[128,128], index: 3, kind: input, shape index: {}]
  %s4 = inlined_call_operand.vmem [shape: f32[1,128], index: 4, kind: input, shape index: {}]
  %s5 = inlined_call_operand.hbm [shape: f32[8,128], index: 5, kind: output, shape index: {}]
  %s6 = sld [smem:[#allocation0]]
  $region30: #{resblock_forward.1} parent=0
    _
  %s8 = ssub.s32 1, %s6
  %s9 = scalar_select 0, %s8, %s6
  $region1: #{resblock_forward.1} parent=0
    #allocation2 [shape = 'u8[4096]{0}', space=vmem, size = 0x1000, scoped, tag = 'output window, operand 0, single buffered']
    #allocation3 [shape = 's32[1]{0}', space=sflag, size = 0x4, scoped, tag = 'scoped memory for resblock_forward.1']
    %10 = vsyncpa [#allocation3], 0
    // Predicated region
    $region2: #{resblock_forward.1} parent=1 // pred_check
      _
    $region3: #{resblock_forward.1} parent=1 // pred_check_branch
      %12 = sbr.rel (0) target = $region5
    $region4: #{resblock_forward.1} parent=1 // pred_region
      _
    $region5: #{resblock_forward.1} parent=1 // pred_fallthru
      _
    // Predicated region
    $region6: #{resblock_forward.1} parent=1 // pred_check
      _
    $region7: #{resblock_forward.1} parent=1 // pred_check_branch
      %14 = sbr.rel (0) target = $region9
    $region8: #{resblock_forward.1} parent=1 // pred_region
      _
    $region9: #{resblock_forward.1} parent=1 // pred_fallthru
      _
    // Predicated region
    $region10: #{resblock_forward.1} parent=1 // pred_check
      _
    $region11: #{resblock_forward.1} parent=1 // pred_check_branch
      %16 = sbr.rel (0) target = $region13
    $region12: #{resblock_forward.1} parent=1 // pred_region
      _
    $region13: #{resblock_forward.1} parent=1 // pred_fallthru
      _
    // Predicated region
    $region14: #{resblock_forward.1} parent=1 // pred_check
      _
    $region15: #{resblock_forward.1} parent=1 // pred_check_branch
      %18 = sbr.rel (0) target = $region17
    $region16: #{resblock_forward.1} parent=1 // pred_region
      _
    $region17: #{resblock_forward.1} parent=1 // pred_fallthru
      _
    // Predicated region
    $region18: #{resblock_forward.1} parent=1 // pred_check
      _
    $region19: #{resblock_forward.1} parent=1 // pred_check_branch
      %20 = sbr.rel (0) target = $region21
    $region20: #{resblock_forward.1} parent=1 // pred_region
      _
    $region21: #{resblock_forward.1} parent=1 // pred_fallthru
      _
    %v21 = vld [vmem:[%s0] sm:$0xff]
    %v22 = vld [vmem:[%s1] sm:$0xff]
    %v23 = vld [vmem:[%s1 + $0x8] sm:$0xff]
    %v24 = vld [vmem:[%s1 + $0x10] sm:$0xff]
    %v25 = vld [vmem:[%s1 + $0x18] sm:$0xff]
    %v26 = vld [vmem:[%s1 + $0x20] sm:$0xff]
    %v27 = vld [vmem:[%s1 + $0x28] sm:$0xff]
    %v28 = vld [vmem:[%s1 + $0x30] sm:$0xff]
    %v29 = vld [vmem:[%s1 + $0x38] sm:$0xff]
    %v30 = vld [vmem:[%s1 + $0x40] sm:$0xff]
    %v31 = vld [vmem:[%s1 + $0x48] sm:$0xff]
    %v32 = vld [vmem:[%s1 + $0x50] sm:$0xff]
    %v33 = vld [vmem:[%s1 + $0x58] sm:$0xff]
    %v34 = vld [vmem:[%s1 + $0x60] sm:$0xff]
    %v35 = vld [vmem:[%s1 + $0x68] sm:$0xff]
    %v36 = vld [vmem:[%s1 + $0x70] sm:$0xff]
    %v37 = vld [vmem:[%s1 + $0x78] sm:$0xff]
    %v38 = vld [vmem:[%s2] sm:$0x1]
    %v40 = vlaneseq
    %v41 = vshrl.u32 %v40, 7
    %v42 = vsub.s32 0, %v41
    %v43 = vrot.slane %v38, %v42
    %45 = vmatprep.subr.mxu0 0.0
    %46 = vmatpush1.msra.mxu0 %v37
    %47 = vmatprep.subr.mxu0 0.0
    %48 = vmatpush1.msra.mxu0 %v36
    %49 = vmatprep.subr.mxu0 0.0
    %50 = vmatpush1.msra.mxu0 %v35
    %51 = vmatprep.subr.mxu0 0.0
    %52 = vmatpush1.msra.mxu0 %v34
    %53 = vmatprep.subr.mxu0 0.0
    %54 = vmatpush1.msra.mxu0 %v33
    %55 = vmatprep.subr.mxu0 0.0
    %56 = vmatpush1.msra.mxu0 %v32
    %57 = vmatprep.subr.mxu0 0.0
    %58 = vmatpush1.msra.mxu0 %v31
    %59 = vmatprep.subr.mxu0 0.0
    %60 = vmatpush1.msra.mxu0 %v30
    %61 = vmatprep.subr.mxu0 0.0
    %62 = vmatpush1.msra.mxu0 %v29
    %63 = vmatprep.subr.mxu0 0.0
    %64 = vmatpush1.msra.mxu0 %v28
    %65 = vmatprep.subr.mxu0 0.0
    %66 = vmatpush1.msra.mxu0 %v27
    %67 = vmatprep.subr.mxu0 0.0
    %68 = vmatpush1.msra.mxu0 %v26
    %69 = vmatprep.subr.mxu0 0.0
    %70 = vmatpush1.msra.mxu0 %v25
    %71 = vmatprep.subr.mxu0 0.0
    %72 = vmatpush1.msra.mxu0 %v24
    %73 = vmatprep.subr.mxu0 0.0
    %74 = vmatpush1.msra.mxu0 %v23
    %75 = vmatprep.subr.mxu0 0.0
    %76 = vmatpush1.msra.mxu0 %v22
    %77 = vmatprep.subr.mxu0 0.0
    %78 = vmatpush2.msra.mxu0 0.0
    %79 = vmatprep.subr.mxu0 0.0
    %80 = vmatpush2.msra.mxu0 0.0
    %81 = vmatprep.subr.mxu0 0.0
    %82 = vmatpush2.msra.mxu0 0.0
    %83 = vmatprep.subr.mxu0 0.0
    %84 = vmatpush2.msra.mxu0 0.0
    %85 = vmatprep.subr.mxu0 0.0
    %86 = vmatpush2.msra.mxu0 0.0
    %87 = vmatprep.subr.mxu0 0.0
    %88 = vmatpush2.msra.mxu0 0.0
    %89 = vmatprep.subr.mxu0 0.0
    %90 = vmatpush2.msra.mxu0 0.0
    %91 = vmatprep.subr.mxu0 0.0
    %92 = vmatpush2.msra.mxu0 0.0
    %93 = vmatprep.subr.mxu0 0.0
    %94 = vmatpush2.msra.mxu0 0.0
    %95 = vmatprep.subr.mxu0 0.0
    %96 = vmatpush2.msra.mxu0 0.0
    %97 = vmatprep.subr.mxu0 0.0
    %98 = vmatpush2.msra.mxu0 0.0
    %99 = vmatprep.subr.mxu0 0.0
    %100 = vmatpush2.msra.mxu0 0.0
    %101 = vmatprep.subr.mxu0 0.0
    %102 = vmatpush2.msra.mxu0 0.0
    %103 = vmatprep.subr.mxu0 0.0
    %104 = vmatpush2.msra.mxu0 0.0
    %105 = vmatprep.subr.mxu0 0.0
    %106 = vmatpush2.msra.mxu0 0.0
    %107 = vmatprep.subr.mxu0 0.0
    %108 = vmatpush2.msra.mxu0 0.0
    %109 = vmatprep.mubr.f32.mxu0 0.0
    %110 = vmatmul.mubr.f32.gmra.mxu0 %v21
    %v111 = vpop.f32.mrf.mxu0
    %v112 = vadd.f32 %v43, %v111
    %v113 = vpop.f32.mrf.mxu0
    %114 = vdwg.mxu0
    %v115 = vmul.f32 %v112, 0.22916667
    %v116 = vmax.f32 %v112, %v115
    %v117 = vld [vmem:[%s3] sm:$0xff]
    %v118 = vld [vmem:[%s3 + $0x8] sm:$0xff]
    %v119 = vld [vmem:[%s3 + $0x10] sm:$0xff]
    %v120 = vld [vmem:[%s3 + $0x18] sm:$0xff]
    %v121 = vld [vmem:[%s3 + $0x20] sm:$0xff]
    %v122 = vld [vmem:[%s3 + $0x28] sm:$0xff]
    %v123 = vld [vmem:[%s3 + $0x30] sm:$0xff]
    %v124 = vld [vmem:[%s3 + $0x38] sm:$0xff]
    %v125 = vld [vmem:[%s3 + $0x40] sm:$0xff]
    %v126 = vld [vmem:[%s3 + $0x48] sm:$0xff]
    %v127 = vld [vmem:[%s3 + $0x50] sm:$0xff]
    %v128 = vld [vmem:[%s3 + $0x58] sm:$0xff]
    %v129 = vld [vmem:[%s3 + $0x60] sm:$0xff]
    %v130 = vld [vmem:[%s3 + $0x68] sm:$0xff]
    %v131 = vld [vmem:[%s3 + $0x70] sm:$0xff]
    %v132 = vld [vmem:[%s3 + $0x78] sm:$0xff]
    %v133 = vld [vmem:[%s4] sm:$0x1]
    %v135 = vlaneseq
    %v136 = vshrl.u32 %v135, 7
    %v137 = vsub.s32 0, %v136
    %v138 = vrot.slane %v133, %v137
    %140 = vmatprep.subr.mxu0 0.0
    %141 = vmatpush1.msra.mxu0 %v132
    %142 = vmatprep.subr.mxu0 0.0
    %143 = vmatpush1.msra.mxu0 %v131
    %144 = vmatprep.subr.mxu0 0.0
    %145 = vmatpush1.msra.mxu0 %v130
    %146 = vmatprep.subr.mxu0 0.0
    %147 = vmatpush1.msra.mxu0 %v129
    %148 = vmatprep.subr.mxu0 0.0
    %149 = vmatpush1.msra.mxu0 %v128
    %150 = vmatprep.subr.mxu0 0.0
    %151 = vmatpush1.msra.mxu0 %v127
    %152 = vmatprep.subr.mxu0 0.0
    %153 = vmatpush1.msra.mxu0 %v126
    %154 = vmatprep.subr.mxu0 0.0
    %155 = vmatpush1.msra.mxu0 %v125
    %156 = vmatprep.subr.mxu0 0.0
    %157 = vmatpush1.msra.mxu0 %v124
    %158 = vmatprep.subr.mxu0 0.0
    %159 = vmatpush1.msra.mxu0 %v123
    %160 = vmatprep.subr.mxu0 0.0
    %161 = vmatpush1.msra.mxu0 %v122
    %162 = vmatprep.subr.mxu0 0.0
    %163 = vmatpush1.msra.mxu0 %v121
    %164 = vmatprep.subr.mxu0 0.0
    %165 = vmatpush1.msra.mxu0 %v120
    %166 = vmatprep.subr.mxu0 0.0
    %167 = vmatpush1.msra.mxu0 %v119
    %168 = vmatprep.subr.mxu0 0.0
    %169 = vmatpush1.msra.mxu0 %v118
    %170 = vmatprep.subr.mxu0 0.0
    %171 = vmatpush1.msra.mxu0 %v117
    %172 = vmatprep.subr.mxu0 0.0
    %173 = vmatpush2.msra.mxu0 0.0
    %174 = vmatprep.subr.mxu0 0.0
    %175 = vmatpush2.msra.mxu0 0.0
    %176 = vmatprep.subr.mxu0 0.0
    %177 = vmatpush2.msra.mxu0 0.0
    %178 = vmatprep.subr.mxu0 0.0
    %179 = vmatpush2.msra.mxu0 0.0
    %180 = vmatprep.subr.mxu0 0.0
    %181 = vmatpush2.msra.mxu0 0.0
    %182 = vmatprep.subr.mxu0 0.0
    %183 = vmatpush2.msra.mxu0 0.0
    %184 = vmatprep.subr.mxu0 0.0
    %185 = vmatpush2.msra.mxu0 0.0
    %186 = vmatprep.subr.mxu0 0.0
    %187 = vmatpush2.msra.mxu0 0.0
    %188 = vmatprep.subr.mxu0 0.0
    %189 = vmatpush2.msra.mxu0 0.0
    %190 = vmatprep.subr.mxu0 0.0
    %191 = vmatpush2.msra.mxu0 0.0
    %192 = vmatprep.subr.mxu0 0.0
    %193 = vmatpush2.msra.mxu0 0.0
    %194 = vmatprep.subr.mxu0 0.0
    %195 = vmatpush2.msra.mxu0 0.0
    %196 = vmatprep.subr.mxu0 0.0
    %197 = vmatpush2.msra.mxu0 0.0
    %198 = vmatprep.subr.mxu0 0.0
    %199 = vmatpush2.msra.mxu0 0.0
    %200 = vmatprep.subr.mxu0 0.0
    %201 = vmatpush2.msra.mxu0 0.0
    %202 = vmatprep.subr.mxu0 0.0
    %203 = vmatpush2.msra.mxu0 0.0
    %204 = vmatprep.mubr.f32.mxu0 0.0
    %205 = vmatmul.mubr.f32.gmra.mxu0 %v116
    %v206 = vpop.f32.mrf.mxu0
    %v207 = vadd.f32 %v138, %v206
    %v208 = vpop.f32.mrf.mxu0
    %209 = vdwg.mxu0
    %v210 = vmul.f32 %v207, 0.22916667
    %v211 = vmax.f32 %v207, %v210
    %v212 = vadd.f32 %v211, %v21
    %213 = vst [vmem:[#allocation2] sm:$0xff] %v212
    // Predicated region
    $region22: #{resblock_forward.1} parent=1 // pred_check
      _
    $region23: #{resblock_forward.1} parent=1 // pred_check_branch
      %215 = sbr.rel (0) target = $region25
    $region24: #{resblock_forward.1} parent=1 // pred_region
      %s217 = ssub.s32 128, 128
      %218 = vsyncadd [#allocation3], %s217
      %s220 = sshll.u32 [#allocation2], 4
      %s221 = int_to_ptr.vmem [resolvable:$true] %s220
      %223 = dma.vmem_to_hbm [thread:$0]  %s221, 128, %s5, [#allocation3]
    $region25: #{resblock_forward.1} parent=1 // pred_fallthru
      _
    // Predicated region
    $region26: #{resblock_forward.1} parent=1 // pred_check
      _
    $region27: #{resblock_forward.1} parent=1 // pred_check_branch
      %225 = sbr.rel (0) target = $region29
    $region28: #{resblock_forward.1} parent=1 // pred_region
      %226 = dma.done [#allocation3], 128
    $region29: #{resblock_forward.1} parent=1 // pred_fallthru
      _
    %227 = vsyncpa [#allocation3], 1

</llo_original>
